<compile_context>
chip_gen: v5e
topology: v5e:2x2
jax: 0.10.0
libtpu: 0.0.40
codegen_flags: <defaults>
</compile_context>

<pallas_src>
import math

import jax
import jax.numpy as jnp
import numpy as np
from jax.experimental import pallas as pl
from jax.experimental.pallas import tpu as pltpu


# ---------------------------------------------------------------------------
# Kernel body
# ---------------------------------------------------------------------------
def _make_attention_kernel(tq, T, D, save_attn, exp_bf16):
    """Builds the body for one (batch b, query-tile qi, head h) grid step.

    Ref layout (inputs, outputs, scratch):
      x_ref    : (1, T, C)      bf16  activations (resident across qi and h)
      wqkv_ref : (3, H, C, D)   bf16  per-head Q|K|V weight columns (resident)
      bqkv_ref : (3, H, 1, D)   f32   per-head Q|K|V biases          (resident)
      wp_ref   : (H, D, C)      bf16  per-head rows of the out-proj  (resident)
      bp_ref   : (1, C)         f32   out-proj bias
      y_ref    : (1, tq, C)           output tile (accumulated over h)
      att_ref  : (1, 1, tq, T)        attention probabilities (save path only)
      k_scr    : (H, T, D)      bf16  K for every head of the current batch
      v_scr    : (H, T, D)      bf16  V for every head of the current batch
    """
    scale = 1.0 / math.sqrt(D)

    def kernel(x_ref, wqkv_ref, bqkv_ref, wp_ref, bp_ref, *rest):
        if save_attn:
            y_ref, att_ref, k_scr, v_scr = rest
        else:
            y_ref, k_scr, v_scr = rest
            att_ref = None

        qi = pl.program_id(1)
        h = pl.program_id(2)

        # --- K / V projection: once per (batch, head), reused by every q tile.
        @pl.when(qi == 0)
        def _compute_kv():
            xf = x_ref[0]                                             # (T, C)
            k = jnp.dot(xf, wqkv_ref[1, h],
                        preferred_element_type=jnp.float32) + bqkv_ref[1, h]
            v = jnp.dot(xf, wqkv_ref[2, h],
                        preferred_element_type=jnp.float32) + bqkv_ref[2, h]
            k_scr[h] = k.astype(jnp.bfloat16)
            v_scr[h] = v.astype(jnp.bfloat16)

        kh = k_scr[h]                                                 # (T, D)
        vh = v_scr[h]

        # --- Q projection for this query tile (softmax scale folded into q).
        row0 = pl.multiple_of(qi * tq, tq)
        xq = x_ref[0, pl.ds(row0, tq), :]                             # (tq, C)
        q = jnp.dot(xq, wqkv_ref[0, h],
                    preferred_element_type=jnp.float32) + bqkv_ref[0, h]
        q = (q * scale).astype(jnp.bfloat16)                          # (tq, D)

        # --- scores + softmax (f32 running math; optional bf16 exp -> EUP).
        s = jax.lax.dot_general(q, kh, (((1,), (1,)), ((), ())),
                                preferred_element_type=jnp.float32)   # (tq, T)
        m = jnp.max(s, axis=-1, keepdims=True)
        if exp_bf16:
            p = jnp.exp((s - m).astype(jnp.bfloat16))
            denom = jnp.sum(p, axis=-1, keepdims=True, dtype=jnp.float32)
        else:
            p = jnp.exp(s - m)
            denom = jnp.sum(p, axis=-1, keepdims=True)
        inv = pl.reciprocal(denom, approx=True)                       # EUP slot
        att = (p * inv.astype(p.dtype)).astype(jnp.bfloat16)          # cast ONCE

        if save_attn:
            att_ref[0, 0] = att.astype(att_ref.dtype)

        # --- weighted values, then this head's slice of the output projection.
        yh = jnp.dot(att, vh, preferred_element_type=jnp.float32)     # (tq, D)
        contrib = jnp.dot(yh.astype(jnp.bfloat16), wp_ref[h],
                          preferred_element_type=jnp.float32)         # (tq, C)

        # y block's index map ignores h, so the tile stays resident across the
        # (innermost) head axis: accumulate directly into it, no extra scratch.
        @pl.when(h == 0)
        def _init_out():
            y_ref[0] = jnp.broadcast_to(bp_ref[...],
                                        contrib.shape).astype(y_ref.dtype)

        y_ref[0] += contrib.astype(y_ref.dtype)

    return kernel


# ---------------------------------------------------------------------------
# Sizing helpers
# ---------------------------------------------------------------------------
def _pick_q_tile(T, q_tile):
    if q_tile is not None:
        if q_tile != T:
            assert T % q_tile == 0 and q_tile % 8 == 0, (
                "q_tile must divide T and be a multiple of 8 (or equal T)")
        return q_tile
    if T <= 512:
        return T
    for cand in (512, 256, 128, 64, 32, 16, 8):
        if T % cand == 0:
            return cand
    return T


def _estimate_vmem_bytes(T, tq, C, D, H, save_attn, att_itemsize):
    """Rough per-step VMEM footprint: double-buffered blocks + scratch + temps."""
    bf16, f32 = 2, 4
    lane = lambda n: -(-n // 128) * 128
    sub16 = lambda n: -(-n // 16) * 16
    blocks = (T * lane(C) * bf16                     # x
              + 3 * H * C * lane(D) * bf16           # wqkv (resident)
              + 3 * H * lane(D) * f32                # bqkv
              + H * sub16(D) * lane(C) * bf16        # wp  (resident)
              + lane(C) * f32                        # bp
              + tq * lane(C) * f32                   # y tile
              + (tq * lane(T) * att_itemsize if save_attn else 0))
    blocks *= 2                                      # double-buffered pipeline
    scratch = 2 * H * sub16(T) * lane(D) * bf16      # k_scr + v_scr
    temps = (4 * tq * lane(T) * f32                  # s / p / att + slack
             + 2 * T * lane(D) * f32                 # k / v f32 (qi == 0 path)
             + 2 * tq * lane(C) * f32)               # q / contrib
    return blocks + scratch + temps


def _device_kind():
    try:
        return jax.devices()[0].device_kind.lower()
    except Exception:
        return ""


def _pick_vmem_limit(est_bytes):
    kind = _device_kind()
    # v5e / v6e expose 128 MiB of physical VMEM; later generations (v7x) 64 MiB.
    cap_mib = 100 if any(v in kind for v in ("v5", "v6")) else 56
    floor = 32 * 1024 * 1024
    return int(min(max(int(est_bytes * 1.25), floor), cap_mib * 1024 * 1024))


def _default_exp_bf16():
    # v6e / v7x have a bf16-capable EUP; older generations keep f32 exp.
    kind = _device_kind()
    return bool(kind) and not any(v in kind for v in ("v2", "v3", "v4", "v5"))


# ---------------------------------------------------------------------------
# Public wrapper
# ---------------------------------------------------------------------------
def causal_self_attention(x, params, n_head, *, save_attn=True,
                          att_dtype=jnp.bfloat16, q_tile=None, exp_bf16=None):
    """Forward pass of the PyTorch module (eval-mode dropout = identity).

    Returns (y, attn_save) when save_attn=True; (y, None) when save_attn=False
    via a path that never writes the (B, H, T, T) attention tensor to HBM.
    """
    B, T, C = x.shape
    H = n_head
    assert C % H == 0
    D = C // H
    tq = _pick_q_tile(T, q_tile)
    n_q_tiles = T // tq
    if exp_bf16 is None:
        exp_bf16 = _default_exp_bf16()

    out_dtype = x.dtype
    x_bf = x.astype(jnp.bfloat16)       # halve the x HBM stream / resident block

    # ---- host-side packing: per-head Q|K|V columns and per-head proj rows ----
    def cols(w):                        # (C, C) -> (H, C, D)
        return w.reshape(C, H, D).transpose(1, 0, 2)

    def cols_b(b):                      # (1, C) -> (H, 1, D)
        return b.reshape(1, H, D).transpose(1, 0, 2)

    wqkv = jnp.stack([cols(params["wq"]), cols(params["wk"]),
                      cols(params["wv"])]).astype(jnp.bfloat16)   # (3, H, C, D)
    bqkv = jnp.stack([cols_b(params["bq"]), cols_b(params["bk"]),
                      cols_b(params["bv"])]).astype(jnp.float32)  # (3, H, 1, D)
    wp_h = params["wp"].reshape(H, D, C).astype(jnp.bfloat16)     # (H, D, C)
    bp = params["bp"].astype(jnp.float32)                         # (1, C)

    # Whole weight arrays use constant index maps, so they stay VMEM-resident
    # and are DMA'd once instead of once per (b, qi, h) grid step.
    in_specs = [
        pl.BlockSpec((1, T, C), lambda b, qi, h: (b, 0, 0)),          # x
        pl.BlockSpec((3, H, C, D), lambda b, qi, h: (0, 0, 0, 0)),    # wqkv
        pl.BlockSpec((3, H, 1, D), lambda b, qi, h: (0, 0, 0, 0)),    # bqkv
        pl.BlockSpec((H, D, C), lambda b, qi, h: (0, 0, 0)),          # wp
        pl.BlockSpec((1, C), lambda b, qi, h: (0, 0)),                # bp
    ]
    y_spec = pl.BlockSpec((1, tq, C), lambda b, qi, h: (b, qi, 0))
    att_itemsize = jnp.dtype(att_dtype).itemsize
    if save_attn:
        out_specs = [y_spec,
                     pl.BlockSpec((1, 1, tq, T), lambda b, qi, h: (b, h, qi, 0))]
        out_shape = (jax.ShapeDtypeStruct((B, T, C), out_dtype),
                     jax.ShapeDtypeStruct((B, H, T, T), att_dtype))
    else:
        out_specs = [y_spec]
        out_shape = (jax.ShapeDtypeStruct((B, T, C), out_dtype),)

    grid_spec = pltpu.PrefetchScalarGridSpec(
        num_scalar_prefetch=0,
        grid=(B, n_q_tiles, H),          # head axis innermost: reduction into y
        in_specs=in_specs,
        out_specs=out_specs,
        scratch_shapes=[pltpu.VMEM((H, T, D), jnp.bfloat16),   # K, all heads
                        pltpu.VMEM((H, T, D), jnp.bfloat16)],  # V, all heads
    )

    vmem_limit = _pick_vmem_limit(
        _estimate_vmem_bytes(T, tq, C, D, H, save_attn, att_itemsize))

    flops = int(8 * B * T * C * C + 4 * B * T * T * C)
    bytes_accessed = int(B * T * C * 2          # x in (bf16)
                         + B * T * C * 4        # y out (f32)
                         + 4 * C * C * 2        # weights (bf16, fetched once)
                         + 4 * C * 4)           # biases
    if save_attn:
        bytes_accessed += int(B * H * T * T * att_itemsize)
    cost = pl.CostEstimate(flops=flops,
                           transcendentals=int(B * H * T * T),
                           bytes_accessed=bytes_accessed)

    kernel = _make_attention_kernel(tq, T, D, save_attn, exp_bf16)
    outs = pl.pallas_call(
        kernel,
        grid_spec=grid_spec,
        out_shape=out_shape,
        compiler_params=pltpu.CompilerParams(
            # qi must be "arbitrary": K/V are computed at qi == 0 and reused by
            # later q tiles, so that axis has to run sequentially on one core.
            dimension_semantics=("parallel", "arbitrary", "arbitrary"),
            vmem_limit_bytes=vmem_limit,
        ),
        cost_estimate=cost,
    )(x_bf, wqkv, bqkv, wp_h, bp)

    if save_attn:
        y, att = outs
        return y, att
    (y,) = outs
    return y, None


# ---------------------------------------------------------------------------
# Pure-JAX reference & test harness
# ---------------------------------------------------------------------------
def _reference(x, params, n_head):
    """Pure-JAX f32 reference mirroring the PyTorch forward (eval-mode dropout)."""
    B, T, C = x.shape
    H, D = n_head, C // n_head
    q = x @ params["wq"] + params["bq"]
    k = x @ params["wk"] + params["bk"]
    v = x @ params["wv"] + params["bv"]
    qh = q.reshape(B, T, H, D).transpose(0, 2, 1, 3)
    kh = k.reshape(B, T, H, D).transpose(0, 2, 1, 3)
    vh = v.reshape(B, T, H, D).transpose(0, 2, 1, 3)
    att = jnp.einsum('bhtd,bhsd->bhts', qh, kh) / math.sqrt(D)
    att = jax.nn.softmax(att, axis=-1)
    y = jnp.einsum('bhts,bhsd->bhtd', att, vh)
    y = y.transpose(0, 2, 1, 3).reshape(B, T, C)
    y = y @ params["wp"] + params["bp"]
    return y, att


def make_params(key, n_embd):
    """Deterministic nn.Linear-style init; weights stored as (C_in, C_out)."""
    keys = jax.random.split(key, 8)
    bound = 1.0 / math.sqrt(n_embd)

    def lin(kw, kb):
        w = jax.random.uniform(kw, (n_embd, n_embd), jnp.float32, -bound, bound)
        b = jax.random.uniform(kb, (1, n_embd), jnp.float32, -bound, bound)
        return w, b

    wq, bq = lin(keys[0], keys[1])
    wk, bk = lin(keys[2], keys[3])
    wv, bv = lin(keys[4], keys[5])
    wp, bp = lin(keys[6], keys[7])
    return dict(wq=wq, bq=bq, wk=wk, bk=bk, wv=wv, bv=bv, wp=wp, bp=bp)


if __name__ == "__main__":
    B, T, C, H = 2, 8, 32, 4   # n_embd=32, n_head=4, head_dim=8

    key = jax.random.PRNGKey(0)
    kx, kp = jax.random.split(key)
    x = jax.random.normal(kx, (B, T, C), jnp.float32)
    params = make_params(kp, C)

    # Module-equivalent path (returns attention probabilities).
    y, att = causal_self_attention(x, params, H, save_attn=True)
    y, att = jax.block_until_ready((y, att))

    # Flash-style path: skips the (B, H, T, T) HBM writeback entirely.
    y_nosave, _ = causal_self_attention(x, params, H, save_attn=False)
    y_nosave = jax.block_until_ready(y_nosave)

    y_ref, att_ref = _reference(x, params, H)
    # bf16 MXU operands, bf16 attn_save, optional bf16 exp and approximate
    # reciprocal => looser tolerance.
    np.testing.assert_allclose(np.asarray(y, np.float32), np.asarray(y_ref),
                               rtol=3e-2, atol=3e-2)
    np.testing.assert_allclose(np.asarray(y_nosave, np.float32),
                               np.asarray(y_ref), rtol=3e-2, atol=3e-2)
    np.testing.assert_allclose(np.asarray(att.astype(jnp.float32)),
                               np.asarray(att_ref), rtol=3e-2, atol=3e-2)

    print("KERNEL_OK")
</pallas_src>

<mosaic_0001>
module attributes {stable_mosaic.version = 11 : i64} {
  func.func @kernel(%arg0: i32, %arg1: i32, %arg2: i32, %arg3: memref<1x8x32xbf16, #tpu.memory_space<vmem>>, %arg4: memref<3x4x32x8xbf16, #tpu.memory_space<vmem>>, %arg5: memref<3x4x1x8xf32, #tpu.memory_space<vmem>>, %arg6: memref<4x8x32xbf16, #tpu.memory_space<vmem>>, %arg7: memref<1x32xf32, #tpu.memory_space<vmem>>, %arg8: memref<1x8x32xf32, #tpu.memory_space<vmem>>, %arg9: memref<1x1x8x8xbf16, #tpu.memory_space<vmem>>, %arg10: memref<4x8x8xbf16, #tpu.memory_space<vmem>>, %arg11: memref<4x8x8xbf16, #tpu.memory_space<vmem>>) attributes {dimension_semantics = [#tpu.dimension_semantics<parallel>, #tpu.dimension_semantics<arbitrary>, #tpu.dimension_semantics<arbitrary>], iteration_bounds = array<i64: 2, 1, 4>, scalar_prefetch = 0 : i64, scratch_operands = 2 : i64, tpu.core_type = #tpu.core_type<tc>, window_params = [{transform_indices = @transform_0, window_bounds = array<i64: 1, 8, 32>}, {pipeline_mode = #tpu.pipeline_mode<synchronous>, transform_indices = @transform_1, window_bounds = array<i64: 3, 4, 32, 8>}, {pipeline_mode = #tpu.pipeline_mode<synchronous>, transform_indices = @transform_2, window_bounds = array<i64: 3, 4, 1, 8>}, {pipeline_mode = #tpu.pipeline_mode<synchronous>, transform_indices = @transform_3, window_bounds = array<i64: 4, 8, 32>}, {pipeline_mode = #tpu.pipeline_mode<synchronous>, transform_indices = @transform_4, window_bounds = array<i64: 1, 32>}, {transform_indices = @transform_5, window_bounds = array<i64: 1, 8, 32>}, {transform_indices = @transform_6, window_bounds = array<i64: 1, 1, 8, 8>}]} {
    %c0_i32 = arith.constant 0 : i32
    %0 = arith.cmpi eq, %arg1, %c0_i32 : i32
    %1 = arith.extui %0 : i1 to i32
    %c0_i32_0 = arith.constant 0 : i32
    %2 = arith.cmpi ne, %1, %c0_i32_0 : i32
    scf.if %2 {
      %c0_32 = arith.constant 0 : index
      %c0_33 = arith.constant 0 : index
      %c0_34 = arith.constant 0 : index
      %58 = vector.load %arg3[%c0_32, %c0_33, %c0_34] : memref<1x8x32xbf16, #tpu.memory_space<vmem>>, vector<1x8x32xbf16>
      %59 = vector.shape_cast %58 : vector<1x8x32xbf16> to vector<8x32xbf16>
      %c1 = arith.constant 1 : index
      %60 = arith.index_cast %arg2 : i32 to index
      %c0_35 = arith.constant 0 : index
      %c0_36 = arith.constant 0 : index
      %61 = vector.load %arg4[%c1, %60, %c0_35, %c0_36] : memref<3x4x32x8xbf16, #tpu.memory_space<vmem>>, vector<1x1x32x8xbf16>
      %62 = vector.shape_cast %61 : vector<1x1x32x8xbf16> to vector<32x8xbf16>
      %cst_37 = arith.constant dense<0.000000e+00> : vector<8x8xf32>
      %63 = tpu.matmul %59, %62, %cst_37 {dimension_numbers = #tpu.dot_dimension_numbers<[1], [0], [0], [1], [0, 0, 1, 1], [], []>} : vector<8x32xbf16>, vector<32x8xbf16>, vector<8x8xf32> -> vector<8x8xf32>
      %c1_38 = arith.constant 1 : index
      %64 = arith.index_cast %arg2 : i32 to index
      %c0_39 = arith.constant 0 : index
      %c0_40 = arith.constant 0 : index
      %65 = vector.load %arg5[%c1_38, %64, %c0_39, %c0_40] : memref<3x4x1x8xf32, #tpu.memory_space<vmem>>, vector<1x1x1x8xf32>
      %66 = vector.shape_cast %65 : vector<1x1x1x8xf32> to vector<1x8xf32>
      %67 = vector.broadcast %66 : vector<1x8xf32> to vector<8x8xf32>
      %68 = arith.addf %63, %67 : vector<8x8xf32>
      %c2 = arith.constant 2 : index
      %69 = arith.index_cast %arg2 : i32 to index
      %c0_41 = arith.constant 0 : index
      %c0_42 = arith.constant 0 : index
      %70 = vector.load %arg4[%c2, %69, %c0_41, %c0_42] : memref<3x4x32x8xbf16, #tpu.memory_space<vmem>>, vector<1x1x32x8xbf16>
      %71 = vector.shape_cast %70 : vector<1x1x32x8xbf16> to vector<32x8xbf16>
      %cst_43 = arith.constant dense<0.000000e+00> : vector<8x8xf32>
      %72 = tpu.matmul %59, %71, %cst_43 {dimension_numbers = #tpu.dot_dimension_numbers<[1], [0], [0], [1], [0, 0, 1, 1], [], []>} : vector<8x32xbf16>, vector<32x8xbf16>, vector<8x8xf32> -> vector<8x8xf32>
      %c2_44 = arith.constant 2 : index
      %73 = arith.index_cast %arg2 : i32 to index
      %c0_45 = arith.constant 0 : index
      %c0_46 = arith.constant 0 : index
      %74 = vector.load %arg5[%c2_44, %73, %c0_45, %c0_46] : memref<3x4x1x8xf32, #tpu.memory_space<vmem>>, vector<1x1x1x8xf32>
      %75 = vector.shape_cast %74 : vector<1x1x1x8xf32> to vector<1x8xf32>
      %76 = vector.broadcast %75 : vector<1x8xf32> to vector<8x8xf32>
      %77 = arith.addf %72, %76 : vector<8x8xf32>
      %78 = arith.truncf %68 : vector<8x8xf32> to vector<8x8xbf16>
      %79 = arith.index_cast %arg2 : i32 to index
      %c0_47 = arith.constant 0 : index
      %c0_48 = arith.constant 0 : index
      %80 = vector.load %arg10[%79, %c0_47, %c0_48] : memref<4x8x8xbf16, #tpu.memory_space<vmem>>, vector<1x8x8xbf16>
      %81 = vector.shape_cast %80 : vector<1x8x8xbf16> to vector<8x8xbf16>
      %82 = vector.shape_cast %78 : vector<8x8xbf16> to vector<1x8x8xbf16>
      tpu.vector_store %arg10[%79, %c0_47, %c0_48], %82 {strides = array<i32>} : memref<4x8x8xbf16, #tpu.memory_space<vmem>>, vector<1x8x8xbf16>,
      %83 = arith.truncf %77 : vector<8x8xf32> to vector<8x8xbf16>
      %84 = arith.index_cast %arg2 : i32 to index
      %c0_49 = arith.constant 0 : index
      %c0_50 = arith.constant 0 : index
      %85 = vector.load %arg11[%84, %c0_49, %c0_50] : memref<4x8x8xbf16, #tpu.memory_space<vmem>>, vector<1x8x8xbf16>
      %86 = vector.shape_cast %85 : vector<1x8x8xbf16> to vector<8x8xbf16>
      %87 = vector.shape_cast %83 : vector<8x8xbf16> to vector<1x8x8xbf16>
      tpu.vector_store %arg11[%84, %c0_49, %c0_50], %87 {strides = array<i32>} : memref<4x8x8xbf16, #tpu.memory_space<vmem>>, vector<1x8x8xbf16>,
    } else {
    }
    %3 = arith.index_cast %arg2 : i32 to index
    %c0 = arith.constant 0 : index
    %c0_1 = arith.constant 0 : index
    %4 = vector.load %arg10[%3, %c0, %c0_1] : memref<4x8x8xbf16, #tpu.memory_space<vmem>>, vector<1x8x8xbf16>
    %5 = vector.shape_cast %4 : vector<1x8x8xbf16> to vector<8x8xbf16>
    %6 = arith.index_cast %arg2 : i32 to index
    %c0_2 = arith.constant 0 : index
    %c0_3 = arith.constant 0 : index
    %7 = vector.load %arg11[%6, %c0_2, %c0_3] : memref<4x8x8xbf16, #tpu.memory_space<vmem>>, vector<1x8x8xbf16>
    %8 = vector.shape_cast %7 : vector<1x8x8xbf16> to vector<8x8xbf16>
    %c8_i32 = arith.constant 8 : i32
    %9 = arith.muli %arg1, %c8_i32 : i32
    %10 = tpu.assume_multiple %9, 8 : i32
    %c0_4 = arith.constant 0 : index
    %11 = arith.index_cast %10 : i32 to index
    %c0_5 = arith.constant 0 : index
    %12 = vector.load %arg3[%c0_4, %11, %c0_5] : memref<1x8x32xbf16, #tpu.memory_space<vmem>>, vector<1x8x32xbf16>
    %13 = vector.shape_cast %12 : vector<1x8x32xbf16> to vector<8x32xbf16>
    %c0_6 = arith.constant 0 : index
    %14 = arith.index_cast %arg2 : i32 to index
    %c0_7 = arith.constant 0 : index
    %c0_8 = arith.constant 0 : index
    %15 = vector.load %arg4[%c0_6, %14, %c0_7, %c0_8] : memref<3x4x32x8xbf16, #tpu.memory_space<vmem>>, vector<1x1x32x8xbf16>
    %16 = vector.shape_cast %15 : vector<1x1x32x8xbf16> to vector<32x8xbf16>
    %cst = arith.constant dense<0.000000e+00> : vector<8x8xf32>
    %17 = tpu.matmul %13, %16, %cst {dimension_numbers = #tpu.dot_dimension_numbers<[1], [0], [0], [1], [0, 0, 1, 1], [], []>} : vector<8x32xbf16>, vector<32x8xbf16>, vector<8x8xf32> -> vector<8x8xf32>
    %c0_9 = arith.constant 0 : index
    %18 = arith.index_cast %arg2 : i32 to index
    %c0_10 = arith.constant 0 : index
    %c0_11 = arith.constant 0 : index
    %19 = vector.load %arg5[%c0_9, %18, %c0_10, %c0_11] : memref<3x4x1x8xf32, #tpu.memory_space<vmem>>, vector<1x1x1x8xf32>
    %20 = vector.shape_cast %19 : vector<1x1x1x8xf32> to vector<1x8xf32>
    %21 = vector.broadcast %20 : vector<1x8xf32> to vector<8x8xf32>
    %22 = arith.addf %17, %21 : vector<8x8xf32>
    %cst_12 = arith.constant 0.353553385 : f32
    %23 = vector.broadcast %cst_12 : f32 to vector<8x8xf32>
    %24 = arith.mulf %22, %23 : vector<8x8xf32>
    %25 = arith.truncf %24 : vector<8x8xf32> to vector<8x8xbf16>
    %cst_13 = arith.constant dense<0.000000e+00> : vector<8x8xf32>
    %26 = tpu.matmul %25, %5, %cst_13 {dimension_numbers = #tpu.dot_dimension_numbers<[1], [1], [0], [0], [0, 0, 1, 0], [], []>} : vector<8x8xbf16>, vector<8x8xbf16>, vector<8x8xf32> -> vector<8x8xf32>
    %cst_14 = arith.constant dense<0xFF800000> : vector<8xf32>
    %27 = vector.multi_reduction <maximumf>, %26, %cst_14 [1] : vector<8x8xf32> to vector<8xf32>
    %28 = vector.shape_cast %27 : vector<8xf32> to vector<8x1xf32>
    %29 = vector.broadcast %28 : vector<8x1xf32> to vector<8x8xf32>
    %30 = arith.subf %26, %29 : vector<8x8xf32>
    %31 = arith.truncf %30 : vector<8x8xf32> to vector<8x8xbf16>
    %32 = math.exp %31 : vector<8x8xbf16>
    %33 = arith.extf %32 : vector<8x8xbf16> to vector<8x8xf32>
    %cst_15 = arith.constant dense<0.000000e+00> : vector<8xf32>
    %34 = vector.multi_reduction <add>, %33, %cst_15 [1] : vector<8x8xf32> to vector<8xf32>
    %35 = vector.shape_cast %34 : vector<8xf32> to vector<8x1xf32>
    %36 = tpu.reciprocal %35 {approx = true} : vector<8x1xf32> -> vector<8x1xf32>
    %37 = arith.truncf %36 : vector<8x1xf32> to vector<8x1xbf16>
    %38 = vector.broadcast %37 : vector<8x1xbf16> to vector<8x8xbf16>
    %39 = arith.mulf %32, %38 : vector<8x8xbf16>
    %c0_16 = arith.constant 0 : index
    %c0_17 = arith.constant 0 : index
    %c0_18 = arith.constant 0 : index
    %c0_19 = arith.constant 0 : index
    %40 = vector.load %arg9[%c0_16, %c0_17, %c0_18, %c0_19] : memref<1x1x8x8xbf16, #tpu.memory_space<vmem>>, vector<1x1x8x8xbf16>
    %41 = vector.shape_cast %40 : vector<1x1x8x8xbf16> to vector<8x8xbf16>
    %42 = vector.shape_cast %39 : vector<8x8xbf16> to vector<1x1x8x8xbf16>
    tpu.vector_store %arg9[%c0_16, %c0_17, %c0_18, %c0_19], %42 {strides = array<i32>} : memref<1x1x8x8xbf16, #tpu.memory_space<vmem>>, vector<1x1x8x8xbf16>,
    %cst_20 = arith.constant dense<0.000000e+00> : vector<8x8xf32>
    %43 = tpu.matmul %39, %8, %cst_20 {dimension_numbers = #tpu.dot_dimension_numbers<[1], [0], [0], [1], [0, 0, 1, 1], [], []>} : vector<8x8xbf16>, vector<8x8xbf16>, vector<8x8xf32> -> vector<8x8xf32>
    %44 = arith.truncf %43 : vector<8x8xf32> to vector<8x8xbf16>
    %45 = arith.index_cast %arg2 : i32 to index
    %c0_21 = arith.constant 0 : index
    %c0_22 = arith.constant 0 : index
    %46 = vector.load %arg6[%45, %c0_21, %c0_22] : memref<4x8x32xbf16, #tpu.memory_space<vmem>>, vector<1x8x32xbf16>
    %47 = vector.shape_cast %46 : vector<1x8x32xbf16> to vector<8x32xbf16>
    %cst_23 = arith.constant dense<0.000000e+00> : vector<8x32xf32>
    %48 = tpu.matmul %44, %47, %cst_23 {dimension_numbers = #tpu.dot_dimension_numbers<[1], [0], [0], [1], [0, 0, 1, 1], [], []>} : vector<8x8xbf16>, vector<8x32xbf16>, vector<8x32xf32> -> vector<8x32xf32>
    %c0_i32_24 = arith.constant 0 : i32
    %49 = arith.cmpi eq, %arg2, %c0_i32_24 : i32
    %50 = arith.extui %49 : i1 to i32
    %c0_i32_25 = arith.constant 0 : i32
    %51 = arith.cmpi ne, %50, %c0_i32_25 : i32
    scf.if %51 {
      %c0_32 = arith.constant 0 : index
      %c0_33 = arith.constant 0 : index
      %58 = vector.load %arg7[%c0_32, %c0_33] : memref<1x32xf32, #tpu.memory_space<vmem>>, vector<1x32xf32>
      %59 = vector.shape_cast %58 : vector<1x32xf32> to vector<1x32xf32>
      %60 = vector.broadcast %59 : vector<1x32xf32> to vector<8x32xf32>
      %c0_34 = arith.constant 0 : index
      %c0_35 = arith.constant 0 : index
      %c0_36 = arith.constant 0 : index
      %61 = vector.load %arg8[%c0_34, %c0_35, %c0_36] : memref<1x8x32xf32, #tpu.memory_space<vmem>>, vector<1x8x32xf32>
      %62 = vector.shape_cast %61 : vector<1x8x32xf32> to vector<8x32xf32>
      %63 = vector.shape_cast %60 : vector<8x32xf32> to vector<1x8x32xf32>
      tpu.vector_store %arg8[%c0_34, %c0_35, %c0_36], %63 {strides = array<i32>} : memref<1x8x32xf32, #tpu.memory_space<vmem>>, vector<1x8x32xf32>,
    } else {
    }
    %c0_26 = arith.constant 0 : index
    %c0_27 = arith.constant 0 : index
    %c0_28 = arith.constant 0 : index
    %52 = vector.load %arg8[%c0_26, %c0_27, %c0_28] : memref<1x8x32xf32, #tpu.memory_space<vmem>>, vector<1x8x32xf32>
    %53 = vector.shape_cast %52 : vector<1x8x32xf32> to vector<8x32xf32>
    %54 = arith.addf %53, %48 : vector<8x32xf32>
    %c0_29 = arith.constant 0 : index
    %c0_30 = arith.constant 0 : index
    %c0_31 = arith.constant 0 : index
    %55 = vector.load %arg8[%c0_29, %c0_30, %c0_31] : memref<1x8x32xf32, #tpu.memory_space<vmem>>, vector<1x8x32xf32>
    %56 = vector.shape_cast %55 : vector<1x8x32xf32> to vector<8x32xf32>
    %57 = vector.shape_cast %54 : vector<8x32xf32> to vector<1x8x32xf32>
    tpu.vector_store %arg8[%c0_29, %c0_30, %c0_31], %57 {strides = array<i32>} : memref<1x8x32xf32, #tpu.memory_space<vmem>>, vector<1x8x32xf32>,
    return
  }
  func.func @transform_0(%arg0: i32, %arg1: i32, %arg2: i32) -> (i32, i32, i32) {
    %c0_i32 = arith.constant 0 : i32
    %c0_i32_0 = arith.constant 0 : i32
    %c0_i32_1 = arith.constant 0 : i32
    return %arg0, %c0_i32, %c0_i32_0 : i32, i32, i32
  }
  func.func @transform_1(%arg0: i32, %arg1: i32, %arg2: i32) -> (i32, i32, i32, i32) {
    %c0_i32 = arith.constant 0 : i32
    %c0_i32_0 = arith.constant 0 : i32
    %c0_i32_1 = arith.constant 0 : i32
    %c0_i32_2 = arith.constant 0 : i32
    %c0_i32_3 = arith.constant 0 : i32
    return %c0_i32, %c0_i32_0, %c0_i32_1, %c0_i32_2 : i32, i32, i32, i32
  }
  func.func @transform_2(%arg0: i32, %arg1: i32, %arg2: i32) -> (i32, i32, i32, i32) {
    %c0_i32 = arith.constant 0 : i32
    %c0_i32_0 = arith.constant 0 : i32
    %c0_i32_1 = arith.constant 0 : i32
    %c0_i32_2 = arith.constant 0 : i32
    %c0_i32_3 = arith.constant 0 : i32
    return %c0_i32, %c0_i32_0, %c0_i32_1, %c0_i32_2 : i32, i32, i32, i32
  }
  func.func @transform_3(%arg0: i32, %arg1: i32, %arg2: i32) -> (i32, i32, i32) {
    %c0_i32 = arith.constant 0 : i32
    %c0_i32_0 = arith.constant 0 : i32
    %c0_i32_1 = arith.constant 0 : i32
    %c0_i32_2 = arith.constant 0 : i32
    return %c0_i32, %c0_i32_0, %c0_i32_1 : i32, i32, i32
  }
  func.func @transform_4(%arg0: i32, %arg1: i32, %arg2: i32) -> (i32, i32) {
    %c0_i32 = arith.constant 0 : i32
    %c0_i32_0 = arith.constant 0 : i32
    %c0_i32_1 = arith.constant 0 : i32
    return %c0_i32, %c0_i32_0 : i32, i32
  }
  func.func @transform_5(%arg0: i32, %arg1: i32, %arg2: i32) -> (i32, i32, i32) {
    %c0_i32 = arith.constant 0 : i32
    %c0_i32_0 = arith.constant 0 : i32
    return %arg0, %arg1, %c0_i32 : i32, i32, i32
  }
  func.func @transform_6(%arg0: i32, %arg1: i32, %arg2: i32) -> (i32, i32, i32, i32) {
    %c0_i32 = arith.constant 0 : i32
    %c0_i32_0 = arith.constant 0 : i32
    return %arg0, %arg2, %arg1, %c0_i32 : i32, i32, i32, i32
  }
}

</mosaic_0001>

<llo_original>
// kernel: tpu_custom_call.1
$region0: #{tpu_custom_call.1}
  #allocation0 [shape = 'u32[]', space=smem, size = 0x4, offset = 0x4, fixed_abs, tag = 'smem constant byte address 0x4 - core index']
  #allocation1 [shape = 'u32[72,128]{1,0:T(1,128)}', space=vmem, size = 0x9000, scoped, tag = 'internal scratch']
  #allocation2 [shape = 'bf16[4,8,8]{2,1,0:T(8,128)(2,1)}', space=vmem, size = 0x2000, scoped, tag = 'scratch operand']
  #allocation3 [shape = 'bf16[4,8,8]{2,1,0:T(8,128)(2,1)}', space=vmem, size = 0x2000, scoped, tag = 'scratch operand']
  %s0 = inlined_call_operand.vmem [shape: bf16[2,8,32], index: 0, kind: input, shape index: {}]
  %s1 = inlined_call_operand.vmem [shape: bf16[3,4,32,8], index: 1, kind: input, shape index: {}]
  %s2 = inlined_call_operand.vmem [shape: f32[3,4,1,8], index: 2, kind: input, shape index: {}]
  %s3 = inlined_call_operand.vmem [shape: bf16[4,8,32], index: 3, kind: input, shape index: {}]
  %s4 = inlined_call_operand.vmem [shape: f32[1,32], index: 4, kind: input, shape index: {}]
  %s5 = inlined_call_operand.hbm [shape: f32[2,8,32], index: 5, kind: output, shape index: {0}]
  %s6 = inlined_call_operand.hbm [shape: bf16[2,4,8,8], index: 6, kind: output, shape index: {1}]
  %7 = xla_tuple %s5, %s6
  %s8 = sld [smem:[#allocation0]]
  $region69: #{tpu_custom_call.1} parent=0
    _
  %s10 = ssub.s32 1, %s8
  %s11 = scalar_select 0, %s10, %s8
  $region1: #{tpu_custom_call.1} parent=0
    #allocation4 [shape = 'u8[8192]{0}', space=vmem, size = 0x2000, scoped, tag = 'output window, operand 0']
    #allocation5 [shape = 's32[2]{0}', space=sflag, size = 0x8, scoped, tag = 'scoped memory for tpu_custom_call.1']
    #allocation6 [shape = 'u8[4096]{0}', space=vmem, size = 0x1000, scoped, tag = 'output window, operand 1']
    #allocation7 [shape = 's32[2]{0}', space=sflag, size = 0x8, scoped, tag = 'scoped memory for tpu_custom_call.1']
    %12 = vsyncpa [#allocation5], 0
    %s13 = scalar_lea.sflag [#allocation5], 1
    %14 = vsyncpa %s13, 0
    %15 = vsyncpa [#allocation7], 0
    %s16 = scalar_lea.sflag [#allocation7], 1
    %17 = vsyncpa %s16, 0
    loop: start=0, step=1, limit=10
    $region2: #{tpu_custom_call.1} parent=1 // loop_pre_header
      _
    $region3: #{tpu_custom_call.1} parent=1 // loop_header
      %s19 = sphi 0, %s23
      %p20 = scmp.ge.s32.totalorder %s19, 10
      %s26 = sphi 0, %s45
      %s27 = sphi 0, %s41
      %s28 = sphi 0, %s37
      %s29 = sphi 0, %s26
      %s30 = sphi 0, %s27
      %s31 = sphi 0, %s28
      %s32 = sphi 0, %s29
      %s33 = sphi 0, %s30
      %s34 = sphi 0, %s31
      %s48 = sphi 0, %s50
      %s51 = sphi 0, %s48
      %s52 = sphi 0, %s51
      %s68 = sphi 0, %s52
      %s72 = sphi 0, %s72
      %s74 = sphi 0, %s72
      %s75 = sphi 0, %s74
      %s89 = sphi 0, %s75
      %s93 = sphi 0, %s93
      %s95 = sphi 0, %s93
      %s96 = sphi 0, %s95
      %s110 = sphi 0, %s96
      %s114 = sphi 0, %s114
      %s116 = sphi 0, %s114
      %s117 = sphi 0, %s116
      %s131 = sphi 0, %s117
      %s135 = sphi 0, %s135
      %s137 = sphi 0, %s135
      %s138 = sphi 0, %s137
      %s152 = sphi 0, %s138
      %s160 = sphi 0, %s162
      %s163 = sphi 0, %s160
      %s164 = sphi 0, %s163
      %s180 = sphi 0, %s164
      %s190 = sphi 0, %s192
      %s193 = sphi 0, %s190
      %s194 = sphi 0, %s193
      %s210 = sphi 0, %s194
    $region4: #{tpu_custom_call.1} parent=1 // loop_header_branch
      %22 = sbr.rel (%p20) target = $region8
    $region5: #{tpu_custom_call.1} parent=1 // loop_body
      %s24 = ssub.s32 %s19, 1
      %s25 = ssub.s32 %s19, 2
      %s35 = sadd.s32 1, %s28
      %p36 = scmp.ge.s32.totalorder %s35, 4
      %s37 = scalar_select %p36, 0, %s35
      %s38 = sadd.s32 1, %s27
      %s39 = scalar_select %p36, %s38, %s27
      %p40 = scmp.ge.s32.totalorder %s39, 1
      %s41 = scalar_select %p40, 0, %s39
      %s42 = sadd.s32 1, %s26
      %s43 = scalar_select %p40, %s42, %s26
      %p44 = scmp.ge.s32.totalorder %s43, 2
      %s45 = scalar_select %p44, 0, %s43
      %s46 = ssub.s32 %s26, %s45
      %p47 = scmp.eq.s32.totalorder %s46, 0
      %s49 = sadd.s32 %s48, 1
      %s50 = scalar_select %p47, %s48, %s49
      %p53 = pneg %p47
      %p54 = scmp.eq.s32.totalorder %s19, 7
      %p55 = por %p53, %p54
      %p56 = scmp.ne.s32.totalorder %s48, %s51
      %p57 = scmp.eq.s32.totalorder %s19, 0
      %p58 = por %p56, %p57
      %p59 = scmp.ne.s32.totalorder %s48, %s51
      %p60 = scmp.eq.s32.totalorder %s24, 7
      %p61 = por %p59, %p60
      %p62 = scmp.ne.s32.totalorder %s51, %s52
      %p63 = scmp.eq.s32.totalorder %s24, 0
      %p64 = por %p62, %p63
      %p65 = scmp.ne.s32.totalorder %s51, %s52
      %p66 = scmp.eq.s32.totalorder %s25, 7
      %p67 = por %p65, %p66
      %p69 = scmp.ne.s32.totalorder %s52, %s68
      %p70 = scmp.eq.s32.totalorder %s25, 0
      %p71 = por %p69, %p70
      %s73 = sadd.s32 %s72, 1
      %p76 = scmp.eq.s32.totalorder %s19, 7
      %p77 = scmp.ne.s32.totalorder %s72, %s74
      %p78 = scmp.eq.s32.totalorder %s19, 0
      %p79 = por %p77, %p78
      %p80 = scmp.ne.s32.totalorder %s72, %s74
      %p81 = scmp.eq.s32.totalorder %s24, 7
      %p82 = por %p80, %p81
      %p83 = scmp.ne.s32.totalorder %s74, %s75
      %p84 = scmp.eq.s32.totalorder %s24, 0
      %p85 = por %p83, %p84
      %p86 = scmp.ne.s32.totalorder %s74, %s75
      %p87 = scmp.eq.s32.totalorder %s25, 7
      %p88 = por %p86, %p87
      %p90 = scmp.ne.s32.totalorder %s75, %s89
      %p91 = scmp.eq.s32.totalorder %s25, 0
      %p92 = por %p90, %p91
      %s94 = sadd.s32 %s93, 1
      %p97 = scmp.eq.s32.totalorder %s19, 7
      %p98 = scmp.ne.s32.totalorder %s93, %s95
      %p99 = scmp.eq.s32.totalorder %s19, 0
      %p100 = por %p98, %p99
      %p101 = scmp.ne.s32.totalorder %s93, %s95
      %p102 = scmp.eq.s32.totalorder %s24, 7
      %p103 = por %p101, %p102
      %p104 = scmp.ne.s32.totalorder %s95, %s96
      %p105 = scmp.eq.s32.totalorder %s24, 0
      %p106 = por %p104, %p105
      %p107 = scmp.ne.s32.totalorder %s95, %s96
      %p108 = scmp.eq.s32.totalorder %s25, 7
      %p109 = por %p107, %p108
      %p111 = scmp.ne.s32.totalorder %s96, %s110
      %p112 = scmp.eq.s32.totalorder %s25, 0
      %p113 = por %p111, %p112
      %s115 = sadd.s32 %s114, 1
      %p118 = scmp.eq.s32.totalorder %s19, 7
      %p119 = scmp.ne.s32.totalorder %s114, %s116
      %p120 = scmp.eq.s32.totalorder %s19, 0
      %p121 = por %p119, %p120
      %p122 = scmp.ne.s32.totalorder %s114, %s116
      %p123 = scmp.eq.s32.totalorder %s24, 7
      %p124 = por %p122, %p123
      %p125 = scmp.ne.s32.totalorder %s116, %s117
      %p126 = scmp.eq.s32.totalorder %s24, 0
      %p127 = por %p125, %p126
      %p128 = scmp.ne.s32.totalorder %s116, %s117
      %p129 = scmp.eq.s32.totalorder %s25, 7
      %p130 = por %p128, %p129
      %p132 = scmp.ne.s32.totalorder %s117, %s131
      %p133 = scmp.eq.s32.totalorder %s25, 0
      %p134 = por %p132, %p133
      %s136 = sadd.s32 %s135, 1
      %p139 = scmp.eq.s32.totalorder %s19, 7
      %p140 = scmp.ne.s32.totalorder %s135, %s137
      %p141 = scmp.eq.s32.totalorder %s19, 0
      %p142 = por %p140, %p141
      %p143 = scmp.ne.s32.totalorder %s135, %s137
      %p144 = scmp.eq.s32.totalorder %s24, 7
      %p145 = por %p143, %p144
      %p146 = scmp.ne.s32.totalorder %s137, %s138
      %p147 = scmp.eq.s32.totalorder %s24, 0
      %p148 = por %p146, %p147
      %p149 = scmp.ne.s32.totalorder %s137, %s138
      %p150 = scmp.eq.s32.totalorder %s25, 7
      %p151 = por %p149, %p150
      %p153 = scmp.ne.s32.totalorder %s138, %s152
      %p154 = scmp.eq.s32.totalorder %s25, 0
      %p155 = por %p153, %p154
      %s156 = ssub.s32 %s26, %s45
      %s157 = ssub.s32 %s27, %s41
      %s158 = sor.u32 %s156, %s157
      %p159 = scmp.eq.s32.totalorder %s158, 0
      %s161 = sadd.s32 %s160, 1
      %s162 = scalar_select %p159, %s160, %s161
      %p165 = pneg %p159
      %p166 = scmp.eq.s32.totalorder %s19, 7
      %p167 = por %p165, %p166
      %p168 = scmp.ne.s32.totalorder %s160, %s163
      %p169 = scmp.eq.s32.totalorder %s19, 0
      %p170 = por %p168, %p169
      %p171 = scmp.ne.s32.totalorder %s160, %s163
      %p172 = scmp.eq.s32.totalorder %s24, 7
      %p173 = por %p171, %p172
      %p174 = scmp.ne.s32.totalorder %s163, %s164
      %p175 = scmp.eq.s32.totalorder %s24, 0
      %p176 = por %p174, %p175
      %p177 = scmp.ne.s32.totalorder %s163, %s164
      %p178 = scmp.eq.s32.totalorder %s25, 7
      %p179 = por %p177, %p178
      %p181 = scmp.ne.s32.totalorder %s164, %s180
      %p182 = scmp.eq.s32.totalorder %s25, 0
      %p183 = por %p181, %p182
      %s184 = ssub.s32 %s26, %s45
      %s185 = ssub.s32 %s28, %s37
      %s186 = sor.u32 %s184, %s185
      %s187 = ssub.s32 %s27, %s41
      %s188 = sor.u32 %s186, %s187
      %p189 = scmp.eq.s32.totalorder %s188, 0
      %s191 = sadd.s32 %s190, 1
      %s192 = scalar_select %p189, %s190, %s191
      %p195 = pneg %p189
      %p196 = scmp.eq.s32.totalorder %s19, 7
      %p197 = por %p195, %p196
      %p198 = scmp.ne.s32.totalorder %s190, %s193
      %p199 = scmp.eq.s32.totalorder %s19, 0
      %p200 = por %p198, %p199
      %p201 = scmp.ne.s32.totalorder %s190, %s193
      %p202 = scmp.eq.s32.totalorder %s24, 7
      %p203 = por %p201, %p202
      %p204 = scmp.ne.s32.totalorder %s193, %s194
      %p205 = scmp.eq.s32.totalorder %s24, 0
      %p206 = por %p204, %p205
      %p207 = scmp.ne.s32.totalorder %s193, %s194
      %p208 = scmp.eq.s32.totalorder %s25, 7
      %p209 = por %p207, %p208
      %p211 = scmp.ne.s32.totalorder %s194, %s210
      %p212 = scmp.eq.s32.totalorder %s25, 0
      %p213 = por %p211, %p212
      %p214 = scmp.le.s32.totalorder 1, %s19
      %p215 = scmp.lt.s32.totalorder %s19, 9
      %p216 = pnand %p214, %p215
      %p217 = pneg %p216
      // Predicated region
      $region9: #{tpu_custom_call.1} parent=5 // pred_check
        _
      $region10: #{tpu_custom_call.1} parent=5 // pred_check_branch
        %219 = sbr.rel (%p216) target = $region12
      $region11: #{tpu_custom_call.1} parent=5 // pred_region
        %s220 = ssub.s32 %s19, 1
        // Predicated region
        $region13: #{tpu_custom_call.1} parent=11 // pred_check
          %p221 = pneg %p85
        $region14: #{tpu_custom_call.1} parent=11 // pred_check_branch
          %223 = sbr.rel (%p221) target = $region16
        $region15: #{tpu_custom_call.1} parent=11 // pred_region
          _
        $region16: #{tpu_custom_call.1} parent=11 // pred_fallthru
          _
        // Predicated region
        $region17: #{tpu_custom_call.1} parent=11 // pred_check
          %p224 = pneg %p106
        $region18: #{tpu_custom_call.1} parent=11 // pred_check_branch
          %226 = sbr.rel (%p224) target = $region20
        $region19: #{tpu_custom_call.1} parent=11 // pred_region
          _
        $region20: #{tpu_custom_call.1} parent=11 // pred_fallthru
          _
        // Predicated region
        $region21: #{tpu_custom_call.1} parent=11 // pred_check
          %p227 = pneg %p127
        $region22: #{tpu_custom_call.1} parent=11 // pred_check_branch
          %229 = sbr.rel (%p227) target = $region24
        $region23: #{tpu_custom_call.1} parent=11 // pred_region
          _
        $region24: #{tpu_custom_call.1} parent=11 // pred_fallthru
          _
        // Predicated region
        $region25: #{tpu_custom_call.1} parent=11 // pred_check
          %p230 = pneg %p148
        $region26: #{tpu_custom_call.1} parent=11 // pred_check_branch
          %232 = sbr.rel (%p230) target = $region28
        $region27: #{tpu_custom_call.1} parent=11 // pred_region
          _
        $region28: #{tpu_custom_call.1} parent=11 // pred_fallthru
          _
      $region12: #{tpu_custom_call.1} parent=5 // pred_fallthru
        _
      %p233 = scmp.lt.s32.totalorder %s19, 8
      // Predicated region
      $region29: #{tpu_custom_call.1} parent=5 // pred_check
        %p234 = pneg %p233
      $region30: #{tpu_custom_call.1} parent=5 // pred_check_branch
        %236 = sbr.rel (%p234) target = $region32
      $region31: #{tpu_custom_call.1} parent=5 // pred_region
        // Predicated region
        $region33: #{tpu_custom_call.1} parent=31 // pred_check
          %p237 = pneg %p58
        $region34: #{tpu_custom_call.1} parent=31 // pred_check_branch
          %239 = sbr.rel (%p237) target = $region36
        $region35: #{tpu_custom_call.1} parent=31 // pred_region
          %p240 = scmp.lt.s32.totalorder %s26, 1
          %s241 = scalar_select %p240, %s26, 1
          %s242 = smul.addr %s241, 4
          %s243 = scalar_lea.vmem %s0, %s242
        $region36: #{tpu_custom_call.1} parent=31 // pred_fallthru
          _
      $region32: #{tpu_custom_call.1} parent=5 // pred_fallthru
        _
      %p244 = scmp.le.s32.totalorder 1, %s19
      %p245 = scmp.lt.s32.totalorder %s19, 9
      %p246 = pnand %p244, %p245
      %p247 = pneg %p246
      // Predicated region
      $region37: #{tpu_custom_call.1} parent=5 // pred_check
        _
      $region38: #{tpu_custom_call.1} parent=5 // pred_check_branch
        %249 = sbr.rel (%p246) target = $region40
      $region39: #{tpu_custom_call.1} parent=5 // pred_region
        %s250 = ssub.s32 %s19, 1
        %p251 = scmp.lt.s32.totalorder %s29, 1
        %s252 = scalar_select %p251, %s29, 1
        %s253 = smul.addr %s252, 4
        %s254 = scalar_lea.vmem %s0, %s253
        %p255 = pneg %p64
        %p256 = pneg %p61
        %p257 = pneg %p85
        %p258 = pneg %p82
        %p259 = pneg %p106
        %p260 = pneg %p103
        %p261 = pneg %p127
        %p262 = pneg %p124
        %p263 = pneg %p148
        %p264 = pneg %p145
        %p265 = pneg %p176
        %p266 = pneg %p173
        %s267 = sand.u32 %s163, 1
        %s268 = scalar_lea.sflag [#allocation5], %s267
        %s269 = sand.u32 %s163, 1
        %s270 = smul.addr %s269, 8
        %s271 = scalar_lea.vmem [#allocation4], %s270
        %p272 = pneg %p206
        %p273 = pneg %p203
        %s274 = sand.u32 %s193, 1
        %s275 = scalar_lea.sflag [#allocation7], %s274
        %s276 = sand.u32 %s193, 1
        %s277 = smul.addr %s276, 4
        %s278 = scalar_lea.vmem [#allocation6], %s277
        %p279 = scmp.lt.s32.totalorder %s29, 1
        %s280 = scalar_select %p279, %s29, 1
        %s281 = smul.addr %s280, 4
        %s282 = scalar_lea.vmem %s0, %s281
        %p284 = scmp.eq.s32.totalorder %s30, 0
        // Predicated region
        $region41: #{tpu_custom_call.1} parent=39 // pred_check
          %p285 = pneg %p284
        $region42: #{tpu_custom_call.1} parent=39 // pred_check_branch
          %287 = sbr.rel (%p285) target = $region44
        $region43: #{tpu_custom_call.1} parent=39 // pred_region
          %v288 = vld [vmem:[%s282] sm:$0xf]
          %s289 = smul.u32 %s31, 4
          %s290 = sadd.s32 %s289, 16
          %s291 = smul.addr %s290, 4
          %s292 = scalar_lea.vmem %s1, %s291
          %v293 = vld [vmem:[%s292] sm:$0xf]
          %v294 = vld [vmem:[%s292 + $0x4] sm:$0xf]
          %v295 = vld [vmem:[%s292 + $0x8] sm:$0xf]
          %v296 = vld [vmem:[%s292 + $0xc] sm:$0xf]
          %s297 = sadd.s32 %s31, 4
          %s298 = scalar_lea.vmem %s2, %s297
          %v299 = vld [vmem:[%s298] sm:$0x1]
          %v301 = vperm.slane %v299, 0
          %v307 = vunpack.c.l.b16 %v293
          %v308 = vunpack.c.l.b16 %v294
          %v309 = vunpack.c.l.b16 %v295
          %v310 = vunpack.c.l.b16 %v296
          %v311 = vpack.c.b16 %v308, %v307
          %v312 = vpack.c.b16 %v310, %v309
          %vm315 = vcmask 261120
          %v317 = vsel %vm315, %v288, 0
          %319 = vmatpush.bf16.msra.mxu0 0
          %320 = vmatpush.bf16.msra.mxu0 0
          %321 = vmatpush.bf16.msra.mxu0 0
          %322 = vmatpush.bf16.msra.mxu0 0
          %323 = vmatpush.bf16.msra.mxu0 0
          %324 = vmatpush.bf16.msra.mxu0 0
          %325 = vmatpush.bf16.msra.mxu0 %v312
          %326 = vmatpush.bf16.msra.mxu0 %v311
          %327 = vmatmul.bf16.gmra.mxu0 %v317
          %v328 = vpop.f32.mrf.mxu0
          %v329 = vadd.f32 %v301, %v328
          %v330 = vpop.f32.mrf.mxu0
          %331 = vdwg.mxu0
          %s332 = sadd.s32 %s289, 32
          %s333 = smul.addr %s332, 4
          %s334 = scalar_lea.vmem %s1, %s333
          %v335 = vld [vmem:[%s334] sm:$0xf]
          %v336 = vld [vmem:[%s334 + $0x4] sm:$0xf]
          %v337 = vld [vmem:[%s334 + $0x8] sm:$0xf]
          %v338 = vld [vmem:[%s334 + $0xc] sm:$0xf]
          %s339 = sadd.s32 %s31, 8
          %s340 = scalar_lea.vmem %s2, %s339
          %v341 = vld [vmem:[%s340] sm:$0x1]
          %v343 = vperm.slane %v341, 0
          %v349 = vunpack.c.l.b16 %v335
          %v350 = vunpack.c.l.b16 %v336
          %v351 = vunpack.c.l.b16 %v337
          %v352 = vunpack.c.l.b16 %v338
          %v353 = vpack.c.b16 %v350, %v349
          %v354 = vpack.c.b16 %v352, %v351
          %357 = vmatpush.bf16.msra.mxu0 0
          %358 = vmatpush.bf16.msra.mxu0 0
          %359 = vmatpush.bf16.msra.mxu0 0
          %360 = vmatpush.bf16.msra.mxu0 0
          %361 = vmatpush.bf16.msra.mxu0 0
          %362 = vmatpush.bf16.msra.mxu0 0
          %363 = vmatpush.bf16.msra.mxu0 %v354
          %364 = vmatpush.bf16.msra.mxu0 %v353
          %365 = vmatmul.bf16.gmra.mxu0 %v317
          %v366 = vpop.f32.mrf.mxu0
          %v367 = vadd.f32 %v343, %v366
          %v368 = vpop.f32.mrf.mxu0
          %369 = vdwg.mxu0
          %v370 = vpack.c.bf16 %v329, %v329
          %s371 = smul.addr %s31, 4
          %s372 = scalar_lea.vmem [#allocation2], %s371
          %vm373 = vcmask 60416
          %374 = vst.msk [vmem:[%s372] sm:$0xf] %vm373, %v370
          %v375 = vpack.c.bf16 %v367, %v367
          %s376 = smul.addr %s31, 4
          %s377 = scalar_lea.vmem [#allocation3], %s376
          %378 = vst.msk [vmem:[%s377] sm:$0xf] %vm373, %v375
        $region44: #{tpu_custom_call.1} parent=39 // pred_fallthru
          _
        %s379 = smul.addr %s31, 4
        %s380 = scalar_lea.vmem [#allocation2], %s379
        %v381 = vld [vmem:[%s380] sm:$0xf]
        %s382 = smul.addr %s31, 4
        %s383 = scalar_lea.vmem [#allocation3], %s382
        %v384 = vld [vmem:[%s383] sm:$0xf]
        %s385 = smul.u32 %s30, 8
        %s386 = sshra.s32 %s385, 3
        %s387 = sand.u32 %s385, 7
        %s388 = smul.addr %s386, 4
        %s389 = scalar_lea.vmem %s282, %s388
        %v390 = vld [vmem:[%s389] sm:$0xf]
        %s391 = smul.u32 %s31, 4
        %s392 = smul.addr %s391, 4
        %s393 = scalar_lea.vmem %s1, %s392
        %v394 = vld [vmem:[%s393] sm:$0xf]
        %v395 = vld [vmem:[%s393 + $0x4] sm:$0xf]
        %v396 = vld [vmem:[%s393 + $0x8] sm:$0xf]
        %v397 = vld [vmem:[%s393 + $0xc] sm:$0xf]
        %s398 = scalar_lea.vmem %s2, %s31
        %v399 = vld [vmem:[%s398] sm:$0x1]
        %v401 = vperm.slane %v399, 0
        %v407 = vunpack.c.l.b16 %v394
        %v408 = vunpack.c.l.b16 %v395
        %v409 = vunpack.c.l.b16 %v396
        %v410 = vunpack.c.l.b16 %v397
        %v411 = vpack.c.b16 %v408, %v407
        %v412 = vpack.c.b16 %v410, %v409
        %vm415 = vcmask 261120
        %v417 = vsel %vm415, %v390, 0
        %419 = vmatpush.bf16.msra.mxu0 0
        %420 = vmatpush.bf16.msra.mxu0 0
        %421 = vmatpush.bf16.msra.mxu0 0
        %422 = vmatpush.bf16.msra.mxu0 0
        %423 = vmatpush.bf16.msra.mxu0 0
        %424 = vmatpush.bf16.msra.mxu0 0
        %425 = vmatpush.bf16.msra.mxu0 %v412
        %426 = vmatpush.bf16.msra.mxu0 %v411
        %427 = vmatmul.bf16.gmra.mxu0 %v417
        %v428 = vpop.f32.mrf.mxu0
        %v429 = vadd.f32 %v401, %v428
        %v430 = vpop.f32.mrf.mxu0
        %431 = vdwg.mxu0
        %v432 = vmul.f32 %v429, 0.35355338
        %v433 = vpack.c.bf16 %v432, %v432
        %vm434 = vcmask 64512
        %v436 = vsel %vm434, %v433, 0
        %v439 = vsel %vm434, %v381, 0
        %441 = vmatpush.bf16.xpose.msra.mxu0 0
        %442 = vmatpush.bf16.xpose.msra.mxu0 0
        %443 = vmatpush.bf16.xpose.msra.mxu0 0
        %444 = vmatpush.bf16.xpose.msra.mxu0 0
        %445 = vmatpush.bf16.xpose.msra.mxu0 0
        %446 = vmatpush.bf16.xpose.msra.mxu0 0
        %447 = vmatpush.bf16.xpose.msra.mxu0 0
        %448 = vmatpush.bf16.xpose.msra.mxu0 %v439
        %449 = vmatmul.bf16.gmra.mxu0 %v436
        %v450 = vpop.f32.mrf.mxu0
        %v451 = vadd.f32 0.0, %v450
        %v452 = vpop.f32.mrf.mxu0
        %453 = vdwg.mxu0
        %v454 = vsel %vm434, %v451, -inf
        %455 = vmax.xlane.f32.xlu0 %v454
        %v456 = vpop.xlane.xlu0 %455
        %v457 = vsub.f32 %v451, %v456
        %v458 = vpack.c.bf16 %v457, %v457
        %v459 = vunpack.c.l.bf16 %v458
        %v460 = vmul.f32 %v459, 1.442695
        %v461 = vpow.pop %v460
        %v462 = vpack.c.bf16 %v461, %v461
        %v463 = vunpack.c.l.bf16 %v462
        %v464 = vsel %vm434, %v463, 0.0
        %465 = vadd.xlane.f32.xlu0 %v464
        %v466 = vpop.xlane.xlu0 %465
        %v467 = vrcp.pop %v466
        %v468 = vpack.c.bf16 %v467, %v467
        %v469 = vunpack.c.l.bf16 %v468
        %v470 = vmul.f32 %v463, %v469
        %v471 = vpack.c.bf16 %v470, %v470
        %vm472 = vcmask 60416
        %473 = vst.msk [vmem:[%s278] sm:$0xf] %vm472, %v471
        %v475 = vsel %vm434, %v471, 0
        %vm477 = vcmask 1043456
        %v479 = vsel %vm477, %v384, 0
        %481 = vmatpush.bf16.msra.mxu0 0
        %482 = vmatpush.bf16.msra.mxu0 0
        %483 = vmatpush.bf16.msra.mxu0 0
        %484 = vmatpush.bf16.msra.mxu0 0
        %485 = vmatpush.bf16.msra.mxu0 0
        %486 = vmatpush.bf16.msra.mxu0 0
        %487 = vmatpush.bf16.msra.mxu0 0
        %488 = vmatpush.bf16.msra.mxu0 %v479
        %489 = vmatmul.bf16.gmra.mxu0 %v475
        %v490 = vpop.f32.mrf.mxu0
        %v491 = vadd.f32 0.0, %v490
        %v492 = vpop.f32.mrf.mxu0
        %493 = vdwg.mxu0
        %v494 = vpack.c.bf16 %v491, %v491
        %s495 = smul.addr %s31, 4
        %s496 = scalar_lea.vmem %s3, %s495
        %v497 = vld [vmem:[%s496] sm:$0xf]
        %v499 = vsel %vm434, %v494, 0
        %v502 = vsel %vm477, %v497, 0
        %504 = vmatpush.bf16.msra.mxu0 0
        %505 = vmatpush.bf16.msra.mxu0 0
        %506 = vmatpush.bf16.msra.mxu0 0
        %507 = vmatpush.bf16.msra.mxu0 0
        %508 = vmatpush.bf16.msra.mxu0 0
        %509 = vmatpush.bf16.msra.mxu0 0
        %510 = vmatpush.bf16.msra.mxu0 0
        %511 = vmatpush.bf16.msra.mxu0 %v502
        %512 = vmatmul.bf16.gmra.mxu0 %v499
        %v513 = vpop.f32.mrf.mxu0
        %v514 = vadd.f32 0.0, %v513
        %v515 = vpop.f32.mrf.mxu0
        %516 = vdwg.mxu0
        %p517 = scmp.eq.s32.totalorder %s31, 0
        // Predicated region
        $region45: #{tpu_custom_call.1} parent=39 // pred_check
          %p518 = pneg %p517
        $region46: #{tpu_custom_call.1} parent=39 // pred_check_branch
          %520 = sbr.rel (%p518) target = $region48
        $region47: #{tpu_custom_call.1} parent=39 // pred_region
          %v521 = vld [vmem:[%s4] sm:$0x1]
          %v523 = vperm.slane %v521, 0
          %525 = vst.msk [vmem:[%s271] sm:$0xff] %vm415, %v523
        $region48: #{tpu_custom_call.1} parent=39 // pred_fallthru
          _
        %v526 = vld [vmem:[%s271] sm:$0xff]
        %v527 = vadd.f32 %v526, %v514
        %528 = vst.msk [vmem:[%s271] sm:$0xff] %vm415, %v527
        %s529 = sand.u32 %s163, 1
        %s530 = scalar_lea.sflag [#allocation5], %s529
        %s531 = sand.u32 %s163, 1
        %s532 = smul.addr %s531, 8
        %s533 = scalar_lea.vmem [#allocation4], %s532
        %s534 = sand.u32 %s193, 1
        %s535 = scalar_lea.sflag [#allocation7], %s534
        %s536 = sand.u32 %s193, 1
        %s537 = smul.addr %s536, 4
        %s538 = scalar_lea.vmem [#allocation6], %s537
        // Predicated region
        $region49: #{tpu_custom_call.1} parent=39 // pred_check
          %p539 = pneg %p173
        $region50: #{tpu_custom_call.1} parent=39 // pred_check_branch
          %541 = sbr.rel (%p539) target = $region52
        $region51: #{tpu_custom_call.1} parent=39 // pred_region
          %543 = vsyncadd %s530, 0
          %s544 = sadd.s32 %s30, %s29
          %s545 = smul.addr %s544, 8
          %s546 = scalar_lea.hbm %s5, %s545
          %s548 = sshll.u32 %s533, 4
          %s549 = int_to_ptr.vmem [resolvable:$true] %s548
          %s550 = sshll.u32 %s546, 4
          %s551 = int_to_ptr.hbm [resolvable:$true] %s550
          %553 = dma.vmem_to_hbm [thread:$0]  %s549, 128, %s551, %s530
        $region52: #{tpu_custom_call.1} parent=39 // pred_fallthru
          _
        // Predicated region
        $region53: #{tpu_custom_call.1} parent=39 // pred_check
          %p554 = pneg %p203
        $region54: #{tpu_custom_call.1} parent=39 // pred_check_branch
          %556 = sbr.rel (%p554) target = $region56
        $region55: #{tpu_custom_call.1} parent=39 // pred_region
          %558 = vsyncadd %s535, 0
          %s559 = sadd.s32 %s30, %s31
          %s560 = smul.addr %s29, 4
          %s561 = sadd.s32 %s559, %s560
          %s562 = smul.addr %s561, 4
          %s563 = scalar_lea.hbm %s6, %s562
          %s565 = sshll.u32 %s538, 4
          %s566 = int_to_ptr.vmem [resolvable:$true] %s565
          %s567 = sshll.u32 %s563, 4
          %s568 = int_to_ptr.hbm [resolvable:$true] %s567
          %570 = dma.vmem_to_hbm [thread:$0]  %s566, 64, %s568, %s535
        $region56: #{tpu_custom_call.1} parent=39 // pred_fallthru
          _
      $region40: #{tpu_custom_call.1} parent=5 // pred_fallthru
        _
      %p571 = scmp.le.s32.totalorder 2, %s19
      // Predicated region
      $region57: #{tpu_custom_call.1} parent=5 // pred_check
        %p572 = pneg %p571
      $region58: #{tpu_custom_call.1} parent=5 // pred_check_branch
        %574 = sbr.rel (%p572) target = $region60
      $region59: #{tpu_custom_call.1} parent=5 // pred_region
        %s575 = ssub.s32 %s19, 2
        // Predicated region
        $region61: #{tpu_custom_call.1} parent=59 // pred_check
          %p576 = pneg %p179
        $region62: #{tpu_custom_call.1} parent=59 // pred_check_branch
          %578 = sbr.rel (%p576) target = $region64
        $region63: #{tpu_custom_call.1} parent=59 // pred_region
          %s579 = sand.u32 %s164, 1
          %s580 = scalar_lea.sflag [#allocation5], %s579
          %s581 = sand.u32 %s164, 1
          %s582 = smul.addr %s581, 8
          %s583 = scalar_lea.vmem [#allocation4], %s582
          %585 = dma.done %s580, 128
        $region64: #{tpu_custom_call.1} parent=59 // pred_fallthru
          _
        // Predicated region
        $region65: #{tpu_custom_call.1} parent=59 // pred_check
          %p586 = pneg %p209
        $region66: #{tpu_custom_call.1} parent=59 // pred_check_branch
          %588 = sbr.rel (%p586) target = $region68
        $region67: #{tpu_custom_call.1} parent=59 // pred_region
          %s589 = sand.u32 %s194, 1
          %s590 = scalar_lea.sflag [#allocation7], %s589
          %s591 = sand.u32 %s194, 1
          %s592 = smul.addr %s591, 4
          %s593 = scalar_lea.vmem [#allocation6], %s592
          %595 = dma.done %s590, 64
        $region68: #{tpu_custom_call.1} parent=59 // pred_fallthru
          _
      $region60: #{tpu_custom_call.1} parent=5 // pred_fallthru
        _
    $region6: #{tpu_custom_call.1} parent=1 // loop_footer
      %s23 = sadd.s32 1, %s19
    $region7: #{tpu_custom_call.1} parent=1 // loop_footer_branch
      %18 = sbr.rel target = $region3
    $region8: #{tpu_custom_call.1} parent=1 // loop_exit
      _
    %596 = vsyncpa [#allocation5], 1
    %s597 = scalar_lea.sflag [#allocation5], 1
    %598 = vsyncpa %s597, 1
    %599 = vsyncpa [#allocation7], 1
    %s600 = scalar_lea.sflag [#allocation7], 1
    %601 = vsyncpa %s600, 1

</llo_original>
